<compile_context>
chip_gen: v7x
topology: tpu7x:2x2x1
jax: 0.10.0
libtpu: 0.0.40
codegen_flags: <defaults>
</compile_context>

<pallas_src>
from types import SimpleNamespace
import math

import numpy as np
import jax
import jax.numpy as jnp
from jax.experimental import pallas as pl
from jax.experimental.pallas import tpu as pltpu


_VMEM_INPUT_BUDGET = 20 << 20   # bytes for double-buffered kernel inputs
_VMEM_LIMIT_BYTES = 32 << 20    # scoped VMEM limit (safe on v5e/v6e/v7x)


# ---------------------------------------------------------------------------
# Kernels
# ---------------------------------------------------------------------------

def _avg_pool_kernel(h_ref, m_ref, inv_ref, o_ref):
    # h: (tB, S, tH) input dtype; m: (tB, S, 1) input dtype; inv: (tB, 1, 1) f32
    # o: (tB, 1, tH)
    num = jnp.sum(h_ref[...] * m_ref[...], axis=1, keepdims=True,
                  dtype=jnp.float32)                       # f32 accumulation
    o_ref[...] = (num * inv_ref[...]).astype(o_ref.dtype)


def _avg_two_layer_pool_kernel(h1_ref, h2_ref, m_ref, inv_ref, o_ref):
    # ((h1 + h2) / 2 * mask).sum(seq) * (1 / mask.sum(seq))
    h = (h1_ref[...] + h2_ref[...]) * 0.5                  # stays in input dtype
    num = jnp.sum(h * m_ref[...], axis=1, keepdims=True, dtype=jnp.float32)
    o_ref[...] = (num * inv_ref[...]).astype(o_ref.dtype)


def _cls_token_kernel(h_ref, o_ref):
    # h: (1, sb, H) (only the first <=8 tokens are fetched) -> o: (1, 1, H)
    o_ref[...] = h_ref[:, 0:1, :]


# ---------------------------------------------------------------------------
# Tile selection
# ---------------------------------------------------------------------------

def _choose_tiles(B, S, H, itemsize, n_hidden):
    """Pick (tB, tH) so the double-buffered input working set fits VMEM."""
    tB = math.gcd(B, 8)          # batch block; divides B, at most 8
    if H % 128 != 0:
        # Unaligned hidden dim (toy/test shapes): take the full dim and let the
        # compiler pad the lane dim. Real transformer H (768/1024/4096) is
        # 128-aligned and goes through the budgeted branch below.
        return tB, H

    def fits(tb, th):
        hid = n_hidden * tb * S * th * itemsize   # hidden tiles
        msk = tb * S * 128 * itemsize             # (tB, S, 1) tile pads lanes->128
        out = tb * 8 * th * itemsize              # (tB, 1, tH) tile pads sublanes->8
        return 2 * (hid + msk + out) <= _VMEM_INPUT_BUDGET   # x2: double buffering

    while True:
        for th in range(H, 127, -128):            # multiples of 128, descending
            if H % th == 0 and fits(tB, th):
                return tB, th
        if tB == 1:
            return 1, 128                         # rely on the raised VMEM limit
        tB //= 2                                  # stays a divisor of B


# ---------------------------------------------------------------------------
# Wrappers around pallas_call
# ---------------------------------------------------------------------------

def _masked_avg_pool(hiddens, attention_mask):
    """hiddens: tuple of 1 or 2 [B, S, H] arrays; attention_mask: [B, S] -> [B, H]."""
    B, S, H = hiddens[0].shape
    dtype = hiddens[0].dtype
    n_hidden = len(hiddens)
    tB, tH = _choose_tiles(B, S, H, jnp.dtype(dtype).itemsize, n_hidden)

    # Mask kept in the hidden dtype (0/1 exact in bf16) for the numerator.
    mask3 = attention_mask.astype(dtype).reshape(B, S, 1)
    # Denominator hoisted out of the kernel (one f32 reciprocal per sequence).
    # Fully padded sequences give inf here -> NaN output, matching torch's 0/0.
    inv_den = (1.0 / jnp.sum(attention_mask.astype(jnp.float32), axis=-1)
               ).reshape(B, 1, 1)

    hidden_spec = pl.BlockSpec((tB, S, tH), lambda i, j: (i, 0, j))
    mask_spec = pl.BlockSpec((tB, S, 1), lambda i, j: (i, 0, 0))
    inv_spec = pl.BlockSpec((tB, 1, 1), lambda i, j: (i, 0, 0))
    out_spec = pl.BlockSpec((tB, 1, tH), lambda i, j: (i, 0, j))

    kernel = _avg_pool_kernel if n_hidden == 1 else _avg_two_layer_pool_kernel

    out = pl.pallas_call(
        kernel,
        out_shape=jax.ShapeDtypeStruct((B, 1, H), dtype),
        grid_spec=pltpu.PrefetchScalarGridSpec(
            num_scalar_prefetch=0,
            # H tiles innermost: mask / inv blocks keep the same index across the
            # inner axis, so their DMA is not re-issued per H tile.
            grid=(B // tB, H // tH),
            in_specs=[hidden_spec] * n_hidden + [mask_spec, inv_spec],
            out_specs=out_spec,
        ),
        compiler_params=pltpu.CompilerParams(
            dimension_semantics=("parallel", "parallel"),
            vmem_limit_bytes=_VMEM_LIMIT_BYTES,
        ),
    )(*hiddens, mask3, inv_den)
    return out.reshape(B, H)


def masked_avg_pool(hidden, mask):
    """hidden: [B, S, H], mask: [B, S] -> [B, H]"""
    return _masked_avg_pool((hidden,), mask)


def masked_avg_two_layer_pool(hidden_a, hidden_b, mask):
    """masked average over seq of (hidden_a + hidden_b)/2 -> [B, H]"""
    return _masked_avg_pool((hidden_a, hidden_b), mask)


def cls_token(hidden):
    """hidden: [B, S, H] -> hidden[:, 0] as [B, H] (slim DMA: first <=8 tokens only)."""
    B, S, H = hidden.shape
    sb = 8 if S >= 8 else S   # sublane-aligned block; only ~8/S of the slab is moved
    out = pl.pallas_call(
        _cls_token_kernel,
        out_shape=jax.ShapeDtypeStruct((B, 1, H), hidden.dtype),
        grid_spec=pltpu.PrefetchScalarGridSpec(
            num_scalar_prefetch=0,
            grid=(B,),
            in_specs=[pl.BlockSpec((1, sb, H), lambda b: (b, 0, 0))],
            out_specs=pl.BlockSpec((1, 1, H), lambda b: (b, 0, 0)),
        ),
        compiler_params=pltpu.CompilerParams(
            dimension_semantics=("parallel",),
            vmem_limit_bytes=_VMEM_LIMIT_BYTES,
        ),
    )(hidden)
    return out.reshape(B, H)


# ---------------------------------------------------------------------------
# Pooler module (JAX / Pallas)
# ---------------------------------------------------------------------------

class Pooler:
    """Parameter-free pooler, mirroring the PyTorch module's semantics."""

    SUPPORTED = ('cls', 'cls_before_pooler', 'avg', 'avg_top2', 'avg_first_last',
                 'concat_first_last', 'concat_with_zero', 'concat_with_random')

    def __init__(self, pooler_type):
        assert pooler_type in self.SUPPORTED, 'unrecognized pooling type %s' % pooler_type
        self.pooler_type = pooler_type

    def __call__(self, outputs, attention_mask):
        last_hidden = outputs.last_hidden_state      # [B, S, H]
        pooler_output = outputs.pooler_output        # [B, H]
        hidden_states = outputs.hidden_states        # tuple of [B, S, H]

        if self.pooler_type == 'cls_before_pooler':
            return cls_token(last_hidden)
        elif self.pooler_type == 'cls':
            # Pass-through of the model's MLP-pooler output; no compute here.
            return pooler_output
        elif self.pooler_type == 'avg':
            return masked_avg_pool(last_hidden, attention_mask)
        elif self.pooler_type == 'avg_first_last':
            return masked_avg_two_layer_pool(hidden_states[0], hidden_states[-1],
                                             attention_mask)
        elif self.pooler_type == 'avg_top2':
            return masked_avg_two_layer_pool(hidden_states[-1], hidden_states[-2],
                                             attention_mask)
        else:
            # TODO(synk): concat_* variants raise NotImplementedError in the reference too.
            raise NotImplementedError


# ---------------------------------------------------------------------------
# Pure-JAX references (for verification)
# ---------------------------------------------------------------------------

def _ref_avg(h, m):
    return (h * m[..., None]).sum(1) / m.sum(-1)[..., None]


def _ref_avg2(h1, h2, m):
    return (((h1 + h2) / 2.0) * m[..., None]).sum(1) / m.sum(-1)[..., None]


# ---------------------------------------------------------------------------
# Main
# ---------------------------------------------------------------------------

if __name__ == "__main__":
    B, S, H = 2, 8, 32
    n_layers = 3  # hidden_states: embeddings + 2 layers

    key = jax.random.PRNGKey(0)
    k_hs, k_pool, k_mask = jax.random.split(key, 3)

    hidden_states = tuple(
        jax.random.normal(jax.random.fold_in(k_hs, i), (B, S, H), dtype=jnp.float32)
        for i in range(n_layers)
    )
    last_hidden = hidden_states[-1]
    pooler_output = jax.random.normal(k_pool, (B, H), dtype=jnp.float32)

    # attention mask: first sequence fully valid, second has 3 padded positions.
    attention_mask = jnp.array(
        [[1] * S, [1] * (S - 3) + [0] * 3], dtype=jnp.float32
    )

    outputs = SimpleNamespace(
        last_hidden_state=last_hidden,
        pooler_output=pooler_output,
        hidden_states=hidden_states,
    )

    results = {}
    for ptype in ('cls', 'cls_before_pooler', 'avg', 'avg_first_last', 'avg_top2'):
        pooler = Pooler(ptype)
        out = pooler(outputs, attention_mask)
        out = jax.block_until_ready(out)
        results[ptype] = np.asarray(out)
        assert out.shape == (B, H), (ptype, out.shape)

    # verify against pure-JAX references
    np.testing.assert_allclose(results['cls'], np.asarray(pooler_output), rtol=1e-6)
    np.testing.assert_allclose(results['cls_before_pooler'],
                               np.asarray(last_hidden[:, 0]), rtol=1e-6)
    np.testing.assert_allclose(results['avg'],
                               np.asarray(_ref_avg(last_hidden, attention_mask)),
                               rtol=1e-5, atol=1e-5)
    np.testing.assert_allclose(results['avg_first_last'],
                               np.asarray(_ref_avg2(hidden_states[0], hidden_states[-1],
                                                    attention_mask)),
                               rtol=1e-5, atol=1e-5)
    np.testing.assert_allclose(results['avg_top2'],
                               np.asarray(_ref_avg2(hidden_states[-1], hidden_states[-2],
                                                    attention_mask)),
                               rtol=1e-5, atol=1e-5)

    print("KERNEL_OK")
</pallas_src>

<mosaic_0001>
module attributes {stable_mosaic.version = 11 : i64} {
  func.func @_cls_token_kernel(%arg0: i32, %arg1: memref<1x8x32xf32, #tpu.memory_space<vmem>>, %arg2: memref<1x1x32xf32, #tpu.memory_space<vmem>>) attributes {dimension_semantics = [#tpu.dimension_semantics<parallel>], iteration_bounds = array<i64: 2>, scalar_prefetch = 0 : i64, scratch_operands = 0 : i64, tpu.core_type = #tpu.core_type<tc>, window_params = [{transform_indices = @transform_0, window_bounds = array<i64: 1, 8, 32>}, {transform_indices = @transform_1, window_bounds = array<i64: 1, 1, 32>}]} {
    %c0 = arith.constant 0 : index
    %c0_0 = arith.constant 0 : index
    %c0_1 = arith.constant 0 : index
    %0 = vector.load %arg1[%c0, %c0_0, %c0_1] : memref<1x8x32xf32, #tpu.memory_space<vmem>>, vector<1x1x32xf32>
    %c0_2 = arith.constant 0 : index
    %c0_3 = arith.constant 0 : index
    %c0_4 = arith.constant 0 : index
    %1 = vector.load %arg2[%c0_2, %c0_3, %c0_4] : memref<1x1x32xf32, #tpu.memory_space<vmem>>, vector<1x1x32xf32>
    tpu.vector_store %arg2[%c0_2, %c0_3, %c0_4], %0 {strides = array<i32>} : memref<1x1x32xf32, #tpu.memory_space<vmem>>, vector<1x1x32xf32>,
    return
  }
  func.func @transform_0(%arg0: i32) -> (i32, i32, i32) {
    %c0_i32 = arith.constant 0 : i32
    %c0_i32_0 = arith.constant 0 : i32
    %c0_i32_1 = arith.constant 0 : i32
    return %arg0, %c0_i32, %c0_i32_0 : i32, i32, i32
  }
  func.func @transform_1(%arg0: i32) -> (i32, i32, i32) {
    %c0_i32 = arith.constant 0 : i32
    %c0_i32_0 = arith.constant 0 : i32
    %c0_i32_1 = arith.constant 0 : i32
    return %arg0, %c0_i32, %c0_i32_0 : i32, i32, i32
  }
}

</mosaic_0001>

<llo_original>
// kernel: tpu_custom_call.1
$region0: #{tpu_custom_call.1}
  #allocation0 [shape = 'u32[]', space=smem, size = 0x4, offset = 0x4, fixed_abs, tag = 'smem constant byte address 0x4 - core index']
  #allocation1 [shape = 'u32[144,128]{1,0:T(1,128)}', space=vmem, size = 0x12000, scoped, tag = 'internal scratch']
  %s0 = inlined_call_operand.hbm [shape: f32[2,8,32], index: 0, kind: input, shape index: {}]
  %s1 = inlined_call_operand.hbm [shape: f32[2,1,32], index: 1, kind: output, shape index: {}]
  %s2 = sld [smem:[#allocation0]]
  $region41: #{tpu_custom_call.1} parent=0
    _
  %s4 = ssub.s32 1, %s2
  %s5 = scalar_select 0, %s4, %s2
  $region1: #{tpu_custom_call.1} parent=0
    #allocation2 [shape = 'u8[8192]{0}', space=vmem, size = 0x2000, scoped, tag = 'input window, operand 0']
    #allocation3 [shape = 's32[2]{0}', space=sflag, size = 0x8, scoped, tag = 'scoped memory for tpu_custom_call.1']
    #allocation4 [shape = 's32[2]{0}', space=sflag, size = 0x8, scoped, tag = 'scoped memory for tpu_custom_call.1']
    #allocation5 [shape = 'u8[1024]{0}', space=vmem, size = 0x400, scoped, tag = 'output window, operand 0']
    %6 = vsyncpa [#allocation3], 0
    %s7 = scalar_lea.sflag [#allocation3], 1
    %8 = vsyncpa %s7, 0
    %9 = vsyncpa [#allocation4], 0
    %s10 = scalar_lea.sflag [#allocation4], 1
    %11 = vsyncpa %s10, 0
    loop: start=0, step=1, limit=4
    $region2: #{tpu_custom_call.1} parent=1 // loop_pre_header
      _
    $region3: #{tpu_custom_call.1} parent=1 // loop_header
      %s13 = sphi 0, %s17
      %p14 = scmp.ge.s32.totalorder %s13, 4
      %s23 = sphi 0, %s25
      %s26 = sphi 0, %s23
      %s27 = sphi 0, %s26
      %s43 = sphi 0, %s27
      %s49 = sphi 0, %s51
      %s52 = sphi 0, %s49
      %s53 = sphi 0, %s52
      %s69 = sphi 0, %s53
    $region4: #{tpu_custom_call.1} parent=1 // loop_header_branch
      %16 = sbr.rel (%p14) target = $region8
    $region5: #{tpu_custom_call.1} parent=1 // loop_body
      %s18 = ssub.s32 %s13, 1
      %s19 = ssub.s32 %s13, 2
      %s20 = sadd.s32 %s13, 1
      %s21 = ssub.s32 %s13, %s20
      %p22 = scmp.eq.s32.totalorder %s21, 0
      %s24 = sadd.s32 %s23, 1
      %s25 = scalar_select %p22, %s23, %s24
      %p28 = pneg %p22
      %p29 = scmp.eq.s32.totalorder %s13, 1
      %p30 = por %p28, %p29
      %p31 = scmp.ne.s32.totalorder %s23, %s26
      %p32 = scmp.eq.s32.totalorder %s13, 0
      %p33 = por %p31, %p32
      %p34 = scmp.ne.s32.totalorder %s23, %s26
      %p35 = scmp.eq.s32.totalorder %s18, 1
      %p36 = por %p34, %p35
      %p37 = scmp.ne.s32.totalorder %s26, %s27
      %p38 = scmp.eq.s32.totalorder %s18, 0
      %p39 = por %p37, %p38
      %p40 = scmp.ne.s32.totalorder %s26, %s27
      %p41 = scmp.eq.s32.totalorder %s19, 1
      %p42 = por %p40, %p41
      %p44 = scmp.ne.s32.totalorder %s27, %s43
      %p45 = scmp.eq.s32.totalorder %s19, 0
      %p46 = por %p44, %p45
      %s47 = ssub.s32 %s13, %s20
      %p48 = scmp.eq.s32.totalorder %s47, 0
      %s50 = sadd.s32 %s49, 1
      %s51 = scalar_select %p48, %s49, %s50
      %p54 = pneg %p48
      %p55 = scmp.eq.s32.totalorder %s13, 1
      %p56 = por %p54, %p55
      %p57 = scmp.ne.s32.totalorder %s49, %s52
      %p58 = scmp.eq.s32.totalorder %s13, 0
      %p59 = por %p57, %p58
      %p60 = scmp.ne.s32.totalorder %s49, %s52
      %p61 = scmp.eq.s32.totalorder %s18, 1
      %p62 = por %p60, %p61
      %p63 = scmp.ne.s32.totalorder %s52, %s53
      %p64 = scmp.eq.s32.totalorder %s18, 0
      %p65 = por %p63, %p64
      %p66 = scmp.ne.s32.totalorder %s52, %s53
      %p67 = scmp.eq.s32.totalorder %s19, 1
      %p68 = por %p66, %p67
      %p70 = scmp.ne.s32.totalorder %s53, %s69
      %p71 = scmp.eq.s32.totalorder %s19, 0
      %p72 = por %p70, %p71
      %p73 = scmp.le.s32.totalorder 1, %s13
      %p74 = scmp.lt.s32.totalorder %s13, 3
      %p75 = pnand %p73, %p74
      %p76 = pneg %p75
      // Predicated region
      $region9: #{tpu_custom_call.1} parent=5 // pred_check
        _
      $region10: #{tpu_custom_call.1} parent=5 // pred_check_branch
        %78 = sbr.rel (%p75) target = $region12
      $region11: #{tpu_custom_call.1} parent=5 // pred_region
        %s79 = ssub.s32 %s13, 1
      $region12: #{tpu_custom_call.1} parent=5 // pred_fallthru
        _
      %p80 = scmp.lt.s32.totalorder %s13, 2
      // Predicated region
      $region13: #{tpu_custom_call.1} parent=5 // pred_check
        %p81 = pneg %p80
      $region14: #{tpu_custom_call.1} parent=5 // pred_check_branch
        %83 = sbr.rel (%p81) target = $region16
      $region15: #{tpu_custom_call.1} parent=5 // pred_region
        // Predicated region
        $region17: #{tpu_custom_call.1} parent=15 // pred_check
          %p84 = pneg %p33
        $region18: #{tpu_custom_call.1} parent=15 // pred_check_branch
          %86 = sbr.rel (%p84) target = $region20
        $region19: #{tpu_custom_call.1} parent=15 // pred_region
          %s87 = sand.u32 %s23, 1
          %s88 = scalar_lea.sflag [#allocation3], %s87
          %s89 = sand.u32 %s23, 1
          %s90 = smul.addr %s89, 8
          %s91 = scalar_lea.vmem [#allocation2], %s90
          %s93 = ssub.s32 128, 128
          %94 = vsyncadd %s88, %s93
          %s95 = smul.addr %s13, 128
          %s96 = scalar_lea.hbm %s0, %s95
          %s98 = sshll.u32 %s91, 4
          %s99 = int_to_ptr.vmem [resolvable:$true] %s98
          %101 = dma.hbm_to_vmem [thread:$0]  %s96, 128, %s99, %s88
        $region20: #{tpu_custom_call.1} parent=15 // pred_fallthru
          _
      $region16: #{tpu_custom_call.1} parent=5 // pred_fallthru
        _
      %p102 = scmp.le.s32.totalorder 1, %s13
      %p103 = scmp.lt.s32.totalorder %s13, 3
      %p104 = pnand %p102, %p103
      %p105 = pneg %p104
      // Predicated region
      $region21: #{tpu_custom_call.1} parent=5 // pred_check
        _
      $region22: #{tpu_custom_call.1} parent=5 // pred_check_branch
        %107 = sbr.rel (%p104) target = $region24
      $region23: #{tpu_custom_call.1} parent=5 // pred_region
        %s108 = ssub.s32 %s13, 1
        %s109 = sand.u32 %s26, 1
        %s110 = scalar_lea.sflag [#allocation3], %s109
        %s111 = sand.u32 %s26, 1
        %s112 = smul.addr %s111, 8
        %s113 = scalar_lea.vmem [#allocation2], %s112
        // Predicated region
        $region25: #{tpu_custom_call.1} parent=23 // pred_check
          %p114 = pneg %p39
        $region26: #{tpu_custom_call.1} parent=23 // pred_check_branch
          %116 = sbr.rel (%p114) target = $region28
        $region27: #{tpu_custom_call.1} parent=23 // pred_region
          %117 = dma.done %s110, 128
        $region28: #{tpu_custom_call.1} parent=23 // pred_fallthru
          _
        %s118 = sand.u32 %s26, 1
        %s119 = scalar_lea.sflag [#allocation3], %s118
        %s120 = sand.u32 %s26, 1
        %s121 = smul.addr %s120, 8
        %s122 = scalar_lea.vmem [#allocation2], %s121
        %p123 = pneg %p39
        %p124 = pneg %p36
        %p125 = pneg %p65
        %p126 = pneg %p62
        %s127 = sand.u32 %s52, 1
        %s128 = scalar_lea.sflag [#allocation4], %s127
        %s129 = sand.u32 %s52, 1
        %s130 = scalar_lea.vmem [#allocation5], %s129
        %v131 = vld [vmem:[%s113] sm:$0x1]
        %vm132 = vcmask 253952
        %133 = vst.msk [vmem:[%s130] sm:$0x1] %vm132, %v131
        %s134 = sand.u32 %s52, 1
        %s135 = scalar_lea.sflag [#allocation4], %s134
        %s136 = sand.u32 %s52, 1
        %s137 = scalar_lea.vmem [#allocation5], %s136
        // Predicated region
        $region29: #{tpu_custom_call.1} parent=23 // pred_check
          %p138 = pneg %p62
        $region30: #{tpu_custom_call.1} parent=23 // pred_check_branch
          %140 = sbr.rel (%p138) target = $region32
        $region31: #{tpu_custom_call.1} parent=23 // pred_region
          %s142 = ssub.s32 16, 16
          %143 = vsyncadd %s135, %s142
          %s144 = smul.addr %s18, 16
          %s145 = scalar_lea.hbm %s1, %s144
          %s147 = sshll.u32 %s137, 4
          %s148 = int_to_ptr.vmem [resolvable:$true] %s147
          %150 = dma.vmem_to_hbm [thread:$0]  %s148, 16, %s145, %s135
        $region32: #{tpu_custom_call.1} parent=23 // pred_fallthru
          _
      $region24: #{tpu_custom_call.1} parent=5 // pred_fallthru
        _
      %p151 = scmp.le.s32.totalorder 2, %s13
      // Predicated region
      $region33: #{tpu_custom_call.1} parent=5 // pred_check
        %p152 = pneg %p151
      $region34: #{tpu_custom_call.1} parent=5 // pred_check_branch
        %154 = sbr.rel (%p152) target = $region36
      $region35: #{tpu_custom_call.1} parent=5 // pred_region
        %s155 = ssub.s32 %s13, 2
        // Predicated region
        $region37: #{tpu_custom_call.1} parent=35 // pred_check
          %p156 = pneg %p68
        $region38: #{tpu_custom_call.1} parent=35 // pred_check_branch
          %158 = sbr.rel (%p156) target = $region40
        $region39: #{tpu_custom_call.1} parent=35 // pred_region
          %s159 = sand.u32 %s53, 1
          %s160 = scalar_lea.sflag [#allocation4], %s159
          %s161 = sand.u32 %s53, 1
          %s162 = scalar_lea.vmem [#allocation5], %s161
          %163 = dma.done %s160, 16
        $region40: #{tpu_custom_call.1} parent=35 // pred_fallthru
          _
      $region36: #{tpu_custom_call.1} parent=5 // pred_fallthru
        _
    $region6: #{tpu_custom_call.1} parent=1 // loop_footer
      %s17 = sadd.s32 1, %s13
    $region7: #{tpu_custom_call.1} parent=1 // loop_footer_branch
      %12 = sbr.rel target = $region3
    $region8: #{tpu_custom_call.1} parent=1 // loop_exit
      _
    %164 = vsyncpa [#allocation3], 1
    %s165 = scalar_lea.sflag [#allocation3], 1
    %166 = vsyncpa %s165, 1
    %167 = vsyncpa [#allocation4], 1
    %s168 = scalar_lea.sflag [#allocation4], 1
    %169 = vsyncpa %s168, 1

</llo_original>
